<compile_context>
chip_gen: v7x
topology: tpu7x:2x2x1
jax: 0.10.0
libtpu: 0.0.40
codegen_flags: <defaults>
</compile_context>

<pallas_src>
import math

import jax
import jax.numpy as jnp
from jax.experimental import pallas as pl
from jax.experimental.pallas import tpu as pltpu


def _resblock_kernel(xp_ref, w1_ref, b1_ref, w2_ref, b2_ref, o_ref, pad_ref):
    # xp_ref:  (H+2, WC) f32   input for this batch element, already zero-padded
    #                          in H (halo rows 0 and H+1) and in C (to C_pad)
    # w*_ref:  (3*WC, WC) bf16 banded (block-Toeplitz over W) conv weights
    # b*_ref:  (1, WC)    f32  bias tiled over W
    # o_ref:   (H, WC)    f32  output
    # pad_ref: (H+2, WC)  bf16 scratch: conv2's padded input (relu(conv1) interior,
    #                          zero halo rows). Interior fully overwritten each step.
    H, WC = o_ref.shape

    def conv3(src_ref, w_ref, b_ref):
        # Three accumulated MXU dots against static row-slices of the banded
        # weight (static ref slices are free; no lane-axis concat / relayout).
        acc = jnp.dot(src_ref[0:H, :].astype(jnp.bfloat16),          # ky = 0
                      w_ref[0:WC, :],
                      preferred_element_type=jnp.float32)
        acc = acc + jnp.dot(src_ref[1:H + 1, :].astype(jnp.bfloat16),  # ky = 1
                            w_ref[WC:2 * WC, :],
                            preferred_element_type=jnp.float32)
        acc = acc + jnp.dot(src_ref[2:H + 2, :].astype(jnp.bfloat16),  # ky = 2
                            w_ref[2 * WC:3 * WC, :],
                            preferred_element_type=jnp.float32)
        return acc + b_ref[...]

    # Zero the two halo rows every grid step (tiny); keeps correctness even when
    # the grid is sharded across TensorCores (each core has its own scratch).
    zrow = jnp.zeros((1, WC), pad_ref.dtype)
    pad_ref[0:1, :] = zrow
    pad_ref[H + 1:H + 2, :] = zrow

    # conv1 + ReLU: written straight into the pad-scratch interior (conv2 input).
    h = jnp.maximum(conv3(xp_ref, w1_ref, b1_ref), 0.0)
    pad_ref[1:H + 1, :] = h.astype(pad_ref.dtype)

    # conv2 + residual (x re-read late from the padded input ref) + ReLU.
    y = conv3(pad_ref, w2_ref, b2_ref) + xp_ref[1:H + 1, :]
    o_ref[...] = jnp.maximum(y, 0.0).astype(o_ref.dtype)


def _build_banded_weight(w_oihw, W):
    """OIHW (Cout,Cin,3,3) -> block-Toeplitz (3*W*Cin, W*Cout).

    Row = ky*W*Cin + wi*Cin + ci, Col = wo*Cout + co,
    Entry = w[co, ci, ky, wi-wo+1] if 0 <= wi-wo+1 <= 2 else 0
    (zero entries implement the W-direction zero padding).
    """
    C = w_oihw.shape[0]
    w = jnp.transpose(w_oihw, (2, 3, 1, 0))        # (ky, kx, Cin, Cout)
    wi = jnp.arange(W)[:, None]                    # (W, 1)
    wo = jnp.arange(W)[None, :]                    # (1, W)
    dx = wi - wo + 1                               # (W, W)
    valid = (dx >= 0) & (dx <= 2)
    dx_c = jnp.clip(dx, 0, 2)
    blocks = []
    for ky in range(3):
        blk = w[ky][dx_c]                                      # (W, W, Cin, Cout)
        blk = jnp.where(valid[:, :, None, None], blk, 0.0)
        blk = jnp.transpose(blk, (0, 2, 1, 3)).reshape(W * C, W * C)
        blocks.append(blk)
    return jnp.concatenate(blocks, axis=0)          # (3*W*C, W*C)


def residual_block(x_nchw, w1, b1, w2, b2):
    """x_nchw: (N, C, H, W) f32; w*: (C, C, 3, 3) PyTorch OIHW; b*: (C,)."""
    N, C, H, W = x_nchw.shape

    # Pad channels so the folded lane dim W*C_pad is a multiple of 128.
    step = 128 // math.gcd(W, 128)
    c_pad = max(C, ((C + step - 1) // step) * step)
    WC = W * c_pad

    # NCHW -> NHWC, one fused pad: H halo rows (+1 top/bottom) and channels C->C_pad,
    # then fold W into the lane axis: (N, H+2, W*C_pad).
    x = jnp.transpose(x_nchw, (0, 2, 3, 1))
    x = jnp.pad(x, ((0, 0), (1, 1), (0, 0), (0, c_pad - C)))
    x = x.reshape(N, H + 2, WC)

    def pad_w(w):
        return jnp.pad(w, ((0, c_pad - C), (0, c_pad - C), (0, 0), (0, 0)))

    def pad_b(b):
        return jnp.tile(jnp.pad(b, (0, c_pad - C)), (W,)).reshape(1, WC)

    w1b = _build_banded_weight(pad_w(w1), W).astype(jnp.bfloat16)   # (3*WC, WC)
    w2b = _build_banded_weight(pad_w(w2), W).astype(jnp.bfloat16)
    b1r = pad_b(b1)
    b2r = pad_b(b2)

    out = pl.pallas_call(
        _resblock_kernel,
        out_shape=jax.ShapeDtypeStruct((N, H, WC), x_nchw.dtype),
        grid_spec=pltpu.PrefetchScalarGridSpec(
            num_scalar_prefetch=0,
            grid=(N,),                                # one batch element per step
            in_specs=[
                pl.BlockSpec((None, H + 2, WC), lambda n: (n, 0, 0)),
                pl.BlockSpec((3 * WC, WC), lambda n: (0, 0)),
                pl.BlockSpec((1, WC), lambda n: (0, 0)),
                pl.BlockSpec((3 * WC, WC), lambda n: (0, 0)),
                pl.BlockSpec((1, WC), lambda n: (0, 0)),
            ],
            out_specs=pl.BlockSpec((None, H, WC), lambda n: (n, 0, 0)),
            scratch_shapes=[pltpu.VMEM((H + 2, WC), jnp.bfloat16)],
        ),
        compiler_params=pltpu.CompilerParams(
            dimension_semantics=("parallel",)),       # v7x: shard batch over 2 TCs
    )(x, w1b, b1r, w2b, b2r)

    # Unfold lanes, drop the zero-padded channels, back to NCHW.
    out = out.reshape(N, H, W, c_pad)[..., :C]
    return jnp.transpose(out, (0, 3, 1, 2))


def _reference(x, w1, b1, w2, b2):
    def conv(inp, w, b):
        y = jax.lax.conv_general_dilated(
            inp, w, window_strides=(1, 1), padding=((1, 1), (1, 1)),
            dimension_numbers=("NCHW", "OIHW", "NCHW"))
        return y + b[None, :, None, None]
    h = jax.nn.relu(conv(x, w1, b1))
    return jax.nn.relu(x + conv(h, w2, b2))


if __name__ == "__main__":
    N, C, H, W = 2, 4, 16, 16
    key = jax.random.PRNGKey(0)
    kx, k1, k2, k3, k4 = jax.random.split(key, 5)

    x = jax.random.normal(kx, (N, C, H, W), jnp.float32)

    # Deterministic PyTorch-style init: U(-1/sqrt(fan_in), 1/sqrt(fan_in))
    fan_in = C * 3 * 3
    bound = 1.0 / (fan_in ** 0.5)
    w1 = jax.random.uniform(k1, (C, C, 3, 3), jnp.float32, -bound, bound)
    b1 = jax.random.uniform(k2, (C,), jnp.float32, -bound, bound)
    w2 = jax.random.uniform(k3, (C, C, 3, 3), jnp.float32, -bound, bound)
    b2 = jax.random.uniform(k4, (C,), jnp.float32, -bound, bound)

    out = residual_block(x, w1, b1, w2, b2)
    out = jax.block_until_ready(out)

    ref = _reference(x, w1, b1, w2, b2)
    assert out.shape == (N, C, H, W)
    # Tolerance loosened vs the f32 reference because matmul operands are bf16
    # (f32 accumulation); two chained convs give ~1e-2-scale deviations.
    assert jnp.allclose(out, ref, rtol=5e-2, atol=5e-2), "mismatch vs reference"

    print("KERNEL_OK")
</pallas_src>

<mosaic_0001>
module attributes {stable_mosaic.version = 11 : i64} {
  func.func @_resblock_kernel(%arg0: i32, %arg1: memref<1x18x128xf32, #tpu.memory_space<vmem>>, %arg2: memref<384x128xbf16, #tpu.memory_space<vmem>>, %arg3: memref<1x128xf32, #tpu.memory_space<vmem>>, %arg4: memref<384x128xbf16, #tpu.memory_space<vmem>>, %arg5: memref<1x128xf32, #tpu.memory_space<vmem>>, %arg6: memref<1x16x128xf32, #tpu.memory_space<vmem>>, %arg7: memref<18x128xbf16, #tpu.memory_space<vmem>>) attributes {dimension_semantics = [#tpu.dimension_semantics<parallel>], iteration_bounds = array<i64: 2>, scalar_prefetch = 0 : i64, scratch_operands = 1 : i64, tpu.core_type = #tpu.core_type<tc>, window_params = [{transform_indices = @transform_0, window_bounds = array<i64: 1, 18, 128>}, {pipeline_mode = #tpu.pipeline_mode<synchronous>, transform_indices = @transform_1, window_bounds = array<i64: 384, 128>}, {pipeline_mode = #tpu.pipeline_mode<synchronous>, transform_indices = @transform_2, window_bounds = array<i64: 1, 128>}, {pipeline_mode = #tpu.pipeline_mode<synchronous>, transform_indices = @transform_3, window_bounds = array<i64: 384, 128>}, {pipeline_mode = #tpu.pipeline_mode<synchronous>, transform_indices = @transform_4, window_bounds = array<i64: 1, 128>}, {transform_indices = @transform_5, window_bounds = array<i64: 1, 16, 128>}]} {
    %cst = arith.constant 0.000000e+00 : bf16
    %0 = vector.broadcast %cst : bf16 to vector<1x128xbf16>
    %c0 = arith.constant 0 : index
    %c0_0 = arith.constant 0 : index
    %1 = vector.load %arg7[%c0, %c0_0] : memref<18x128xbf16, #tpu.memory_space<vmem>>, vector<1x128xbf16>
    tpu.vector_store %arg7[%c0, %c0_0], %0 {strides = array<i32>} : memref<18x128xbf16, #tpu.memory_space<vmem>>, vector<1x128xbf16>,
    %c17 = arith.constant 17 : index
    %c0_1 = arith.constant 0 : index
    %2 = vector.load %arg7[%c17, %c0_1] : memref<18x128xbf16, #tpu.memory_space<vmem>>, vector<1x128xbf16>
    tpu.vector_store %arg7[%c17, %c0_1], %0 {strides = array<i32>} : memref<18x128xbf16, #tpu.memory_space<vmem>>, vector<1x128xbf16>,
    %c0_2 = arith.constant 0 : index
    %c0_3 = arith.constant 0 : index
    %c0_4 = arith.constant 0 : index
    %3 = vector.load %arg1[%c0_2, %c0_3, %c0_4] : memref<1x18x128xf32, #tpu.memory_space<vmem>>, vector<1x16x128xf32>
    %4 = vector.shape_cast %3 : vector<1x16x128xf32> to vector<16x128xf32>
    %5 = arith.truncf %4 : vector<16x128xf32> to vector<16x128xbf16>
    %c0_5 = arith.constant 0 : index
    %c0_6 = arith.constant 0 : index
    %6 = vector.load %arg2[%c0_5, %c0_6] : memref<384x128xbf16, #tpu.memory_space<vmem>>, vector<128x128xbf16>
    %cst_7 = arith.constant dense<0.000000e+00> : vector<16x128xf32>
    %7 = tpu.matmul %5, %6, %cst_7 {dimension_numbers = #tpu.dot_dimension_numbers<[1], [0], [0], [1], [0, 0, 1, 1], [], []>} : vector<16x128xbf16>, vector<128x128xbf16>, vector<16x128xf32> -> vector<16x128xf32>
    %c0_8 = arith.constant 0 : index
    %c1 = arith.constant 1 : index
    %c0_9 = arith.constant 0 : index
    %8 = vector.load %arg1[%c0_8, %c1, %c0_9] : memref<1x18x128xf32, #tpu.memory_space<vmem>>, vector<1x16x128xf32>
    %9 = vector.shape_cast %8 : vector<1x16x128xf32> to vector<16x128xf32>
    %10 = arith.truncf %9 : vector<16x128xf32> to vector<16x128xbf16>
    %c128 = arith.constant 128 : index
    %c0_10 = arith.constant 0 : index
    %11 = vector.load %arg2[%c128, %c0_10] : memref<384x128xbf16, #tpu.memory_space<vmem>>, vector<128x128xbf16>
    %cst_11 = arith.constant dense<0.000000e+00> : vector<16x128xf32>
    %12 = tpu.matmul %10, %11, %cst_11 {dimension_numbers = #tpu.dot_dimension_numbers<[1], [0], [0], [1], [0, 0, 1, 1], [], []>} : vector<16x128xbf16>, vector<128x128xbf16>, vector<16x128xf32> -> vector<16x128xf32>
    %13 = arith.addf %7, %12 : vector<16x128xf32>
    %c0_12 = arith.constant 0 : index
    %c2 = arith.constant 2 : index
    %c0_13 = arith.constant 0 : index
    %14 = vector.load %arg1[%c0_12, %c2, %c0_13] : memref<1x18x128xf32, #tpu.memory_space<vmem>>, vector<1x16x128xf32>
    %15 = vector.shape_cast %14 : vector<1x16x128xf32> to vector<16x128xf32>
    %16 = arith.truncf %15 : vector<16x128xf32> to vector<16x128xbf16>
    %c256 = arith.constant 256 : index
    %c0_14 = arith.constant 0 : index
    %17 = vector.load %arg2[%c256, %c0_14] : memref<384x128xbf16, #tpu.memory_space<vmem>>, vector<128x128xbf16>
    %cst_15 = arith.constant dense<0.000000e+00> : vector<16x128xf32>
    %18 = tpu.matmul %16, %17, %cst_15 {dimension_numbers = #tpu.dot_dimension_numbers<[1], [0], [0], [1], [0, 0, 1, 1], [], []>} : vector<16x128xbf16>, vector<128x128xbf16>, vector<16x128xf32> -> vector<16x128xf32>
    %19 = arith.addf %13, %18 : vector<16x128xf32>
    %c0_16 = arith.constant 0 : index
    %c0_17 = arith.constant 0 : index
    %20 = vector.load %arg3[%c0_16, %c0_17] : memref<1x128xf32, #tpu.memory_space<vmem>>, vector<1x128xf32>
    %21 = vector.broadcast %20 : vector<1x128xf32> to vector<16x128xf32>
    %22 = arith.addf %19, %21 : vector<16x128xf32>
    %cst_18 = arith.constant 0.000000e+00 : f32
    %23 = vector.broadcast %cst_18 : f32 to vector<16x128xf32>
    %24 = arith.maximumf %22, %23 : vector<16x128xf32>
    %25 = arith.truncf %24 : vector<16x128xf32> to vector<16x128xbf16>
    %c1_19 = arith.constant 1 : index
    %c0_20 = arith.constant 0 : index
    %26 = vector.load %arg7[%c1_19, %c0_20] : memref<18x128xbf16, #tpu.memory_space<vmem>>, vector<16x128xbf16>
    tpu.vector_store %arg7[%c1_19, %c0_20], %25 {strides = array<i32>} : memref<18x128xbf16, #tpu.memory_space<vmem>>, vector<16x128xbf16>,
    %c0_21 = arith.constant 0 : index
    %c0_22 = arith.constant 0 : index
    %27 = vector.load %arg7[%c0_21, %c0_22] : memref<18x128xbf16, #tpu.memory_space<vmem>>, vector<16x128xbf16>
    %c0_23 = arith.constant 0 : index
    %c0_24 = arith.constant 0 : index
    %28 = vector.load %arg4[%c0_23, %c0_24] : memref<384x128xbf16, #tpu.memory_space<vmem>>, vector<128x128xbf16>
    %cst_25 = arith.constant dense<0.000000e+00> : vector<16x128xf32>
    %29 = tpu.matmul %27, %28, %cst_25 {dimension_numbers = #tpu.dot_dimension_numbers<[1], [0], [0], [1], [0, 0, 1, 1], [], []>} : vector<16x128xbf16>, vector<128x128xbf16>, vector<16x128xf32> -> vector<16x128xf32>
    %c1_26 = arith.constant 1 : index
    %c0_27 = arith.constant 0 : index
    %30 = vector.load %arg7[%c1_26, %c0_27] : memref<18x128xbf16, #tpu.memory_space<vmem>>, vector<16x128xbf16>
    %c128_28 = arith.constant 128 : index
    %c0_29 = arith.constant 0 : index
    %31 = vector.load %arg4[%c128_28, %c0_29] : memref<384x128xbf16, #tpu.memory_space<vmem>>, vector<128x128xbf16>
    %cst_30 = arith.constant dense<0.000000e+00> : vector<16x128xf32>
    %32 = tpu.matmul %30, %31, %cst_30 {dimension_numbers = #tpu.dot_dimension_numbers<[1], [0], [0], [1], [0, 0, 1, 1], [], []>} : vector<16x128xbf16>, vector<128x128xbf16>, vector<16x128xf32> -> vector<16x128xf32>
    %33 = arith.addf %29, %32 : vector<16x128xf32>
    %c2_31 = arith.constant 2 : index
    %c0_32 = arith.constant 0 : index
    %34 = vector.load %arg7[%c2_31, %c0_32] : memref<18x128xbf16, #tpu.memory_space<vmem>>, vector<16x128xbf16>
    %c256_33 = arith.constant 256 : index
    %c0_34 = arith.constant 0 : index
    %35 = vector.load %arg4[%c256_33, %c0_34] : memref<384x128xbf16, #tpu.memory_space<vmem>>, vector<128x128xbf16>
    %cst_35 = arith.constant dense<0.000000e+00> : vector<16x128xf32>
    %36 = tpu.matmul %34, %35, %cst_35 {dimension_numbers = #tpu.dot_dimension_numbers<[1], [0], [0], [1], [0, 0, 1, 1], [], []>} : vector<16x128xbf16>, vector<128x128xbf16>, vector<16x128xf32> -> vector<16x128xf32>
    %37 = arith.addf %33, %36 : vector<16x128xf32>
    %c0_36 = arith.constant 0 : index
    %c0_37 = arith.constant 0 : index
    %38 = vector.load %arg5[%c0_36, %c0_37] : memref<1x128xf32, #tpu.memory_space<vmem>>, vector<1x128xf32>
    %39 = vector.broadcast %38 : vector<1x128xf32> to vector<16x128xf32>
    %40 = arith.addf %37, %39 : vector<16x128xf32>
    %c0_38 = arith.constant 0 : index
    %c1_39 = arith.constant 1 : index
    %c0_40 = arith.constant 0 : index
    %41 = vector.load %arg1[%c0_38, %c1_39, %c0_40] : memref<1x18x128xf32, #tpu.memory_space<vmem>>, vector<1x16x128xf32>
    %42 = vector.shape_cast %41 : vector<1x16x128xf32> to vector<16x128xf32>
    %43 = arith.addf %40, %42 : vector<16x128xf32>
    %cst_41 = arith.constant 0.000000e+00 : f32
    %44 = vector.broadcast %cst_41 : f32 to vector<16x128xf32>
    %45 = arith.maximumf %43, %44 : vector<16x128xf32>
    %c0_42 = arith.constant 0 : index
    %c0_43 = arith.constant 0 : index
    %c0_44 = arith.constant 0 : index
    %46 = vector.load %arg6[%c0_42, %c0_43, %c0_44] : memref<1x16x128xf32, #tpu.memory_space<vmem>>, vector<1x16x128xf32>
    %47 = vector.shape_cast %46 : vector<1x16x128xf32> to vector<16x128xf32>
    %48 = vector.shape_cast %45 : vector<16x128xf32> to vector<1x16x128xf32>
    tpu.vector_store %arg6[%c0_42, %c0_43, %c0_44], %48 {strides = array<i32>} : memref<1x16x128xf32, #tpu.memory_space<vmem>>, vector<1x16x128xf32>,
    return
  }
  func.func @transform_0(%arg0: i32) -> (i32, i32, i32) {
    %c0_i32 = arith.constant 0 : i32
    %c0_i32_0 = arith.constant 0 : i32
    %c0_i32_1 = arith.constant 0 : i32
    return %arg0, %c0_i32, %c0_i32_0 : i32, i32, i32
  }
  func.func @transform_1(%arg0: i32) -> (i32, i32) {
    %c0_i32 = arith.constant 0 : i32
    %c0_i32_0 = arith.constant 0 : i32
    %c0_i32_1 = arith.constant 0 : i32
    return %c0_i32, %c0_i32_0 : i32, i32
  }
  func.func @transform_2(%arg0: i32) -> (i32, i32) {
    %c0_i32 = arith.constant 0 : i32
    %c0_i32_0 = arith.constant 0 : i32
    %c0_i32_1 = arith.constant 0 : i32
    return %c0_i32, %c0_i32_0 : i32, i32
  }
  func.func @transform_3(%arg0: i32) -> (i32, i32) {
    %c0_i32 = arith.constant 0 : i32
    %c0_i32_0 = arith.constant 0 : i32
    %c0_i32_1 = arith.constant 0 : i32
    return %c0_i32, %c0_i32_0 : i32, i32
  }
  func.func @transform_4(%arg0: i32) -> (i32, i32) {
    %c0_i32 = arith.constant 0 : i32
    %c0_i32_0 = arith.constant 0 : i32
    %c0_i32_1 = arith.constant 0 : i32
    return %c0_i32, %c0_i32_0 : i32, i32
  }
  func.func @transform_5(%arg0: i32) -> (i32, i32, i32) {
    %c0_i32 = arith.constant 0 : i32
    %c0_i32_0 = arith.constant 0 : i32
    %c0_i32_1 = arith.constant 0 : i32
    return %arg0, %c0_i32, %c0_i32_0 : i32, i32, i32
  }
}

</mosaic_0001>

<llo_original>
// kernel: tpu_custom_call.1
$region0: #{tpu_custom_call.1}
  #allocation0 [shape = 'u32[]', space=smem, size = 0x4, offset = 0x4, fixed_abs, tag = 'smem constant byte address 0x4 - core index']
  #allocation1 [shape = 'u32[144,128]{1,0:T(1,128)}', space=vmem, size = 0x12000, scoped, tag = 'internal scratch']
  #allocation2 [shape = 'bf16[18,128]{1,0:T(8,128)(2,1)}', space=vmem, size = 0x1800, scoped, tag = 'scratch operand']
  %s0 = inlined_call_operand.vmem [shape: f32[2,18,128], index: 0, kind: input, shape index: {}]
  %s1 = inlined_call_operand.hbm [shape: bf16[384,128], index: 1, kind: input, shape index: {}]
  %s2 = inlined_call_operand.vmem [shape: f32[1,128], index: 2, kind: input, shape index: {}]
  %s3 = inlined_call_operand.hbm [shape: bf16[384,128], index: 3, kind: input, shape index: {}]
  %s4 = inlined_call_operand.vmem [shape: f32[1,128], index: 4, kind: input, shape index: {}]
  %s5 = inlined_call_operand.hbm [shape: f32[2,16,128], index: 5, kind: output, shape index: {}]
  %s6 = sld [smem:[#allocation0]]
  $region61: #{tpu_custom_call.1} parent=0
    _
  %s8 = ssub.s32 1, %s6
  %s9 = scalar_select 0, %s8, %s6
  $region1: #{tpu_custom_call.1} parent=0
    #allocation3 [shape = 'u8[98304]{0}', space=vmem, size = 0x18000, scoped, tag = 'input window, operand 1, single buffered']
    #allocation4 [shape = 's32[2]{0}', space=sflag, size = 0x8, scoped, tag = 'scoped memory for tpu_custom_call.1']
    #allocation5 [shape = 's32[2]{0}', space=sflag, size = 0x8, scoped, tag = 'scoped memory for tpu_custom_call.1']
    #allocation6 [shape = 'u8[98304]{0}', space=vmem, size = 0x18000, scoped, tag = 'input window, operand 3, single buffered']
    #allocation7 [shape = 's32[1]{0}', space=sflag, size = 0x4, scoped, tag = 'scoped memory for tpu_custom_call.1']
    #allocation8 [shape = 'u8[16384]{0}', space=vmem, size = 0x4000, scoped, tag = 'output window, operand 0']
    %10 = vsyncpa [#allocation4], 0
    %11 = vsyncpa [#allocation7], 0
    %12 = vsyncpa [#allocation5], 0
    %s13 = scalar_lea.sflag [#allocation5], 1
    %14 = vsyncpa %s13, 0
    loop: start=0, step=1, limit=4
    $region2: #{tpu_custom_call.1} parent=1 // loop_pre_header
      _
    $region3: #{tpu_custom_call.1} parent=1 // loop_header
      %s16 = sphi 0, %s20
      %p17 = scmp.ge.s32.totalorder %s16, 4
      %s26 = sphi 0, %s28
      %s29 = sphi 0, %s26
      %s30 = sphi 0, %s29
      %s46 = sphi 0, %s30
      %s50 = sphi 0, %s50
      %s52 = sphi 0, %s50
      %s53 = sphi 0, %s52
      %s67 = sphi 0, %s53
      %s71 = sphi 0, %s71
      %s73 = sphi 0, %s71
      %s74 = sphi 0, %s73
      %s88 = sphi 0, %s74
      %s92 = sphi 0, %s92
      %s94 = sphi 0, %s92
      %s95 = sphi 0, %s94
      %s109 = sphi 0, %s95
      %s113 = sphi 0, %s113
      %s115 = sphi 0, %s113
      %s116 = sphi 0, %s115
      %s130 = sphi 0, %s116
      %s136 = sphi 0, %s138
      %s139 = sphi 0, %s136
      %s140 = sphi 0, %s139
      %s156 = sphi 0, %s140
    $region4: #{tpu_custom_call.1} parent=1 // loop_header_branch
      %19 = sbr.rel (%p17) target = $region8
    $region5: #{tpu_custom_call.1} parent=1 // loop_body
      %s21 = ssub.s32 %s16, 1
      %s22 = ssub.s32 %s16, 2
      %s23 = sadd.s32 %s16, 1
      %s24 = ssub.s32 %s16, %s23
      %p25 = scmp.eq.s32.totalorder %s24, 0
      %s27 = sadd.s32 %s26, 1
      %s28 = scalar_select %p25, %s26, %s27
      %p31 = pneg %p25
      %p32 = scmp.eq.s32.totalorder %s16, 1
      %p33 = por %p31, %p32
      %p34 = scmp.ne.s32.totalorder %s26, %s29
      %p35 = scmp.eq.s32.totalorder %s16, 0
      %p36 = por %p34, %p35
      %p37 = scmp.ne.s32.totalorder %s26, %s29
      %p38 = scmp.eq.s32.totalorder %s21, 1
      %p39 = por %p37, %p38
      %p40 = scmp.ne.s32.totalorder %s29, %s30
      %p41 = scmp.eq.s32.totalorder %s21, 0
      %p42 = por %p40, %p41
      %p43 = scmp.ne.s32.totalorder %s29, %s30
      %p44 = scmp.eq.s32.totalorder %s22, 1
      %p45 = por %p43, %p44
      %p47 = scmp.ne.s32.totalorder %s30, %s46
      %p48 = scmp.eq.s32.totalorder %s22, 0
      %p49 = por %p47, %p48
      %s51 = sadd.s32 %s50, 1
      %p54 = scmp.eq.s32.totalorder %s16, 1
      %p55 = scmp.ne.s32.totalorder %s50, %s52
      %p56 = scmp.eq.s32.totalorder %s16, 0
      %p57 = por %p55, %p56
      %p58 = scmp.ne.s32.totalorder %s50, %s52
      %p59 = scmp.eq.s32.totalorder %s21, 1
      %p60 = por %p58, %p59
      %p61 = scmp.ne.s32.totalorder %s52, %s53
      %p62 = scmp.eq.s32.totalorder %s21, 0
      %p63 = por %p61, %p62
      %p64 = scmp.ne.s32.totalorder %s52, %s53
      %p65 = scmp.eq.s32.totalorder %s22, 1
      %p66 = por %p64, %p65
      %p68 = scmp.ne.s32.totalorder %s53, %s67
      %p69 = scmp.eq.s32.totalorder %s22, 0
      %p70 = por %p68, %p69
      %s72 = sadd.s32 %s71, 1
      %p75 = scmp.eq.s32.totalorder %s16, 1
      %p76 = scmp.ne.s32.totalorder %s71, %s73
      %p77 = scmp.eq.s32.totalorder %s16, 0
      %p78 = por %p76, %p77
      %p79 = scmp.ne.s32.totalorder %s71, %s73
      %p80 = scmp.eq.s32.totalorder %s21, 1
      %p81 = por %p79, %p80
      %p82 = scmp.ne.s32.totalorder %s73, %s74
      %p83 = scmp.eq.s32.totalorder %s21, 0
      %p84 = por %p82, %p83
      %p85 = scmp.ne.s32.totalorder %s73, %s74
      %p86 = scmp.eq.s32.totalorder %s22, 1
      %p87 = por %p85, %p86
      %p89 = scmp.ne.s32.totalorder %s74, %s88
      %p90 = scmp.eq.s32.totalorder %s22, 0
      %p91 = por %p89, %p90
      %s93 = sadd.s32 %s92, 1
      %p96 = scmp.eq.s32.totalorder %s16, 1
      %p97 = scmp.ne.s32.totalorder %s92, %s94
      %p98 = scmp.eq.s32.totalorder %s16, 0
      %p99 = por %p97, %p98
      %p100 = scmp.ne.s32.totalorder %s92, %s94
      %p101 = scmp.eq.s32.totalorder %s21, 1
      %p102 = por %p100, %p101
      %p103 = scmp.ne.s32.totalorder %s94, %s95
      %p104 = scmp.eq.s32.totalorder %s21, 0
      %p105 = por %p103, %p104
      %p106 = scmp.ne.s32.totalorder %s94, %s95
      %p107 = scmp.eq.s32.totalorder %s22, 1
      %p108 = por %p106, %p107
      %p110 = scmp.ne.s32.totalorder %s95, %s109
      %p111 = scmp.eq.s32.totalorder %s22, 0
      %p112 = por %p110, %p111
      %s114 = sadd.s32 %s113, 1
      %p117 = scmp.eq.s32.totalorder %s16, 1
      %p118 = scmp.ne.s32.totalorder %s113, %s115
      %p119 = scmp.eq.s32.totalorder %s16, 0
      %p120 = por %p118, %p119
      %p121 = scmp.ne.s32.totalorder %s113, %s115
      %p122 = scmp.eq.s32.totalorder %s21, 1
      %p123 = por %p121, %p122
      %p124 = scmp.ne.s32.totalorder %s115, %s116
      %p125 = scmp.eq.s32.totalorder %s21, 0
      %p126 = por %p124, %p125
      %p127 = scmp.ne.s32.totalorder %s115, %s116
      %p128 = scmp.eq.s32.totalorder %s22, 1
      %p129 = por %p127, %p128
      %p131 = scmp.ne.s32.totalorder %s116, %s130
      %p132 = scmp.eq.s32.totalorder %s22, 0
      %p133 = por %p131, %p132
      %s134 = ssub.s32 %s16, %s23
      %p135 = scmp.eq.s32.totalorder %s134, 0
      %s137 = sadd.s32 %s136, 1
      %s138 = scalar_select %p135, %s136, %s137
      %p141 = pneg %p135
      %p142 = scmp.eq.s32.totalorder %s16, 1
      %p143 = por %p141, %p142
      %p144 = scmp.ne.s32.totalorder %s136, %s139
      %p145 = scmp.eq.s32.totalorder %s16, 0
      %p146 = por %p144, %p145
      %p147 = scmp.ne.s32.totalorder %s136, %s139
      %p148 = scmp.eq.s32.totalorder %s21, 1
      %p149 = por %p147, %p148
      %p150 = scmp.ne.s32.totalorder %s139, %s140
      %p151 = scmp.eq.s32.totalorder %s21, 0
      %p152 = por %p150, %p151
      %p153 = scmp.ne.s32.totalorder %s139, %s140
      %p154 = scmp.eq.s32.totalorder %s22, 1
      %p155 = por %p153, %p154
      %p157 = scmp.ne.s32.totalorder %s140, %s156
      %p158 = scmp.eq.s32.totalorder %s22, 0
      %p159 = por %p157, %p158
      %p160 = scmp.le.s32.totalorder 1, %s16
      %p161 = scmp.lt.s32.totalorder %s16, 3
      %p162 = pnand %p160, %p161
      %p163 = pneg %p162
      // Predicated region
      $region9: #{tpu_custom_call.1} parent=5 // pred_check
        _
      $region10: #{tpu_custom_call.1} parent=5 // pred_check_branch
        %165 = sbr.rel (%p162) target = $region12
      $region11: #{tpu_custom_call.1} parent=5 // pred_region
        %s166 = ssub.s32 %s16, 1
        // Predicated region
        $region13: #{tpu_custom_call.1} parent=11 // pred_check
          %p167 = pneg %p63
        $region14: #{tpu_custom_call.1} parent=11 // pred_check_branch
          %169 = sbr.rel (%p167) target = $region16
        $region15: #{tpu_custom_call.1} parent=11 // pred_region
          %s171 = ssub.s32 3072, 3072
          %172 = vsyncadd [#allocation4], %s171
          %s173 = sshll.u32 [#allocation3], 4
          %s174 = int_to_ptr.vmem [resolvable:$true] %s173
          %179 = dma.hbm_to_vmem [thread:$0]  %s1, 3072, %s174, [#allocation4], 64, 64, 4
        $region16: #{tpu_custom_call.1} parent=11 // pred_fallthru
          _
        // Predicated region
        $region17: #{tpu_custom_call.1} parent=11 // pred_check
          %p180 = pneg %p84
        $region18: #{tpu_custom_call.1} parent=11 // pred_check_branch
          %182 = sbr.rel (%p180) target = $region20
        $region19: #{tpu_custom_call.1} parent=11 // pred_region
          _
        $region20: #{tpu_custom_call.1} parent=11 // pred_fallthru
          _
        // Predicated region
        $region21: #{tpu_custom_call.1} parent=11 // pred_check
          %p183 = pneg %p105
        $region22: #{tpu_custom_call.1} parent=11 // pred_check_branch
          %185 = sbr.rel (%p183) target = $region24
        $region23: #{tpu_custom_call.1} parent=11 // pred_region
          %s187 = ssub.s32 3072, 3072
          %188 = vsyncadd [#allocation7], %s187
          %s189 = sshll.u32 [#allocation6], 4
          %s190 = int_to_ptr.vmem [resolvable:$true] %s189
          %195 = dma.hbm_to_vmem [thread:$0]  %s3, 3072, %s190, [#allocation7], 64, 64, 4
        $region24: #{tpu_custom_call.1} parent=11 // pred_fallthru
          _
        // Predicated region
        $region25: #{tpu_custom_call.1} parent=11 // pred_check
          %p196 = pneg %p126
        $region26: #{tpu_custom_call.1} parent=11 // pred_check_branch
          %198 = sbr.rel (%p196) target = $region28
        $region27: #{tpu_custom_call.1} parent=11 // pred_region
          _
        $region28: #{tpu_custom_call.1} parent=11 // pred_fallthru
          _
      $region12: #{tpu_custom_call.1} parent=5 // pred_fallthru
        _
      %p199 = scmp.lt.s32.totalorder %s16, 2
      // Predicated region
      $region29: #{tpu_custom_call.1} parent=5 // pred_check
        %p200 = pneg %p199
      $region30: #{tpu_custom_call.1} parent=5 // pred_check_branch
        %202 = sbr.rel (%p200) target = $region32
      $region31: #{tpu_custom_call.1} parent=5 // pred_region
        // Predicated region
        $region33: #{tpu_custom_call.1} parent=31 // pred_check
          %p203 = pneg %p36
        $region34: #{tpu_custom_call.1} parent=31 // pred_check_branch
          %205 = sbr.rel (%p203) target = $region36
        $region35: #{tpu_custom_call.1} parent=31 // pred_region
          %p206 = scmp.lt.s32.totalorder %s16, 1
          %s207 = scalar_select %p206, %s16, 1
          %s208 = smul.addr %s207, 3
          %s209 = smul.addr %s208, 8
          %s210 = scalar_lea.vmem %s0, %s209
        $region36: #{tpu_custom_call.1} parent=31 // pred_fallthru
          _
      $region32: #{tpu_custom_call.1} parent=5 // pred_fallthru
        _
      %p211 = scmp.le.s32.totalorder 1, %s16
      %p212 = scmp.lt.s32.totalorder %s16, 3
      %p213 = pnand %p211, %p212
      %p214 = pneg %p213
      // Predicated region
      $region37: #{tpu_custom_call.1} parent=5 // pred_check
        _
      $region38: #{tpu_custom_call.1} parent=5 // pred_check_branch
        %216 = sbr.rel (%p213) target = $region40
      $region39: #{tpu_custom_call.1} parent=5 // pred_region
        %s217 = ssub.s32 %s16, 1
        // Predicated region
        $region41: #{tpu_custom_call.1} parent=39 // pred_check
          %p218 = pneg %p63
        $region42: #{tpu_custom_call.1} parent=39 // pred_check_branch
          %220 = sbr.rel (%p218) target = $region44
        $region43: #{tpu_custom_call.1} parent=39 // pred_region
          %221 = dma.done [#allocation4], 3072
        $region44: #{tpu_custom_call.1} parent=39 // pred_fallthru
          _
        // Predicated region
        $region45: #{tpu_custom_call.1} parent=39 // pred_check
          %p222 = pneg %p105
        $region46: #{tpu_custom_call.1} parent=39 // pred_check_branch
          %224 = sbr.rel (%p222) target = $region48
        $region47: #{tpu_custom_call.1} parent=39 // pred_region
          %225 = dma.done [#allocation7], 3072
        $region48: #{tpu_custom_call.1} parent=39 // pred_fallthru
          _
        %p226 = scmp.lt.s32.totalorder %s21, 1
        %s227 = scalar_select %p226, %s21, 1
        %s228 = smul.addr %s227, 3
        %s229 = smul.addr %s228, 8
        %s230 = scalar_lea.vmem %s0, %s229
        %p231 = pneg %p42
        %p232 = pneg %p39
        %p233 = pneg %p63
        %p234 = pneg %p60
        %p235 = pneg %p84
        %p236 = pneg %p81
        %p237 = pneg %p105
        %p238 = pneg %p102
        %p239 = pneg %p126
        %p240 = pneg %p123
        %p241 = pneg %p152
        %p242 = pneg %p149
        %s243 = sand.u32 %s139, 1
        %s244 = scalar_lea.sflag [#allocation5], %s243
        %s245 = sand.u32 %s139, 1
        %s246 = smul.addr %s245, 16
        %s247 = scalar_lea.vmem [#allocation8], %s246
        %p248 = scmp.lt.s32.totalorder %s21, 1
        %s249 = scalar_select %p248, %s21, 1
        %s250 = smul.addr %s249, 3
        %s251 = smul.addr %s250, 8
        %s252 = scalar_lea.vmem %s0, %s251
        %vm254 = vcmask 1040384
        %vm255 = vsmask.f32 256
        %vm256 = vmand %vm254, %vm255
        %v257 = vld [vmem:[#allocation2] sm:$0x1]
        %v258 = vsel %vm256, 0, %v257
        %259 = vst [vmem:[#allocation2] sm:$0x1] %v258
        %vm260 = vsmask.f32 7938
        %vm261 = vmand %vm254, %vm260
        %v262 = vld [vmem:[#allocation2 + $0x8] sm:$0x1]
        %v263 = vsel %vm261, 0, %v262
        %264 = vst [vmem:[#allocation2 + $0x8] sm:$0x1] %v263
        %v265 = vld [vmem:[%s252] sm:$0xff]
        %v266 = vld [vmem:[%s252 + $0x8] sm:$0xff]
        %v267 = vpack.c.bf16 %v266, %v265
        %v268 = vld [vmem:[#allocation3] sm:$0xf]
        %v269 = vld [vmem:[#allocation3 + $0x4] sm:$0xf]
        %v270 = vld [vmem:[#allocation3 + $0x8] sm:$0xf]
        %v271 = vld [vmem:[#allocation3 + $0xc] sm:$0xf]
        %v272 = vld [vmem:[#allocation3 + $0x10] sm:$0xf]
        %v273 = vld [vmem:[#allocation3 + $0x14] sm:$0xf]
        %v274 = vld [vmem:[#allocation3 + $0x18] sm:$0xf]
        %v275 = vld [vmem:[#allocation3 + $0x1c] sm:$0xf]
        %v276 = vld [vmem:[#allocation3 + $0x20] sm:$0xf]
        %v277 = vld [vmem:[#allocation3 + $0x24] sm:$0xf]
        %v278 = vld [vmem:[#allocation3 + $0x28] sm:$0xf]
        %v279 = vld [vmem:[#allocation3 + $0x2c] sm:$0xf]
        %v280 = vld [vmem:[#allocation3 + $0x30] sm:$0xf]
        %v281 = vld [vmem:[#allocation3 + $0x34] sm:$0xf]
        %v282 = vld [vmem:[#allocation3 + $0x38] sm:$0xf]
        %v283 = vld [vmem:[#allocation3 + $0x3c] sm:$0xf]
        %v284 = vld [vmem:[%s252 + $0x1] sm:$0xff]
        %v285 = vld [vmem:[%s252 + $0x9] sm:$0xff]
        %v286 = vpack.c.bf16 %v285, %v284
        %v287 = vld [vmem:[#allocation3 + $0x40] sm:$0xf]
        %v288 = vld [vmem:[#allocation3 + $0x44] sm:$0xf]
        %v289 = vld [vmem:[#allocation3 + $0x48] sm:$0xf]
        %v290 = vld [vmem:[#allocation3 + $0x4c] sm:$0xf]
        %v291 = vld [vmem:[#allocation3 + $0x50] sm:$0xf]
        %v292 = vld [vmem:[#allocation3 + $0x54] sm:$0xf]
        %v293 = vld [vmem:[#allocation3 + $0x58] sm:$0xf]
        %v294 = vld [vmem:[#allocation3 + $0x5c] sm:$0xf]
        %v295 = vld [vmem:[#allocation3 + $0x60] sm:$0xf]
        %v296 = vld [vmem:[#allocation3 + $0x64] sm:$0xf]
        %v297 = vld [vmem:[#allocation3 + $0x68] sm:$0xf]
        %v298 = vld [vmem:[#allocation3 + $0x6c] sm:$0xf]
        %v299 = vld [vmem:[#allocation3 + $0x70] sm:$0xf]
        %v300 = vld [vmem:[#allocation3 + $0x74] sm:$0xf]
        %v301 = vld [vmem:[#allocation3 + $0x78] sm:$0xf]
        %v302 = vld [vmem:[#allocation3 + $0x7c] sm:$0xf]
        %v319 = vunpack.c.l.b16 %v287
        %v320 = vunpack.c.l.b16 %v288
        %v321 = vunpack.c.l.b16 %v289
        %v322 = vunpack.c.l.b16 %v290
        %v323 = vunpack.c.l.b16 %v291
        %v324 = vunpack.c.l.b16 %v292
        %v325 = vunpack.c.l.b16 %v293
        %v326 = vunpack.c.l.b16 %v294
        %v327 = vunpack.c.l.b16 %v295
        %v328 = vunpack.c.l.b16 %v296
        %v329 = vunpack.c.l.b16 %v297
        %v330 = vunpack.c.l.b16 %v298
        %v331 = vunpack.c.l.b16 %v299
        %v332 = vunpack.c.l.b16 %v300
        %v333 = vunpack.c.l.b16 %v301
        %v334 = vunpack.c.l.b16 %v302
        %v335 = vpack.c.b16 %v320, %v319
        %v336 = vpack.c.b16 %v322, %v321
        %v337 = vpack.c.b16 %v324, %v323
        %v338 = vpack.c.b16 %v326, %v325
        %v339 = vpack.c.b16 %v328, %v327
        %v340 = vpack.c.b16 %v330, %v329
        %v341 = vpack.c.b16 %v332, %v331
        %v342 = vpack.c.b16 %v334, %v333
        %351 = vmatprep.subr.bf16.mxu0 0
        %352 = vmatpush1.bf16.msra.mxu0 %v335
        %353 = vmatprep.subr.bf16.mxu0 0
        %354 = vmatpush1.bf16.msra.mxu0 %v336
        %355 = vmatprep.subr.bf16.mxu0 0
        %356 = vmatpush1.bf16.msra.mxu0 %v337
        %357 = vmatprep.subr.bf16.mxu0 0
        %358 = vmatpush1.bf16.msra.mxu0 %v338
        %359 = vmatprep.subr.bf16.mxu0 0
        %360 = vmatpush1.bf16.msra.mxu0 %v339
        %361 = vmatprep.subr.bf16.mxu0 0
        %362 = vmatpush1.bf16.msra.mxu0 %v340
        %363 = vmatprep.subr.bf16.mxu0 0
        %364 = vmatpush1.bf16.msra.mxu0 %v341
        %365 = vmatprep.subr.bf16.mxu0 0
        %366 = vmatpush1.bf16.msra.mxu0 %v342
        %367 = vmatprep.subr.bf16.mxu0 0
        %368 = vmatpush1.bf16.msra.mxu0 0
        %369 = vmatprep.subr.bf16.mxu0 0
        %370 = vmatpush1.bf16.msra.mxu0 0
        %371 = vmatprep.subr.bf16.mxu0 0
        %372 = vmatpush1.bf16.msra.mxu0 0
        %373 = vmatprep.subr.bf16.mxu0 0
        %374 = vmatpush1.bf16.msra.mxu0 0
        %375 = vmatprep.subr.bf16.mxu0 0
        %376 = vmatpush1.bf16.msra.mxu0 0
        %377 = vmatprep.subr.bf16.mxu0 0
        %378 = vmatpush1.bf16.msra.mxu0 0
        %379 = vmatprep.subr.bf16.mxu0 0
        %380 = vmatpush1.bf16.msra.mxu0 0
        %381 = vmatprep.subr.bf16.mxu0 0
        %382 = vmatpush1.bf16.msra.mxu0 0
        %383 = vmatprep.mubr.bf16.mxu0 0
        %384 = vmatmul.mubr.bf16.gmra.mrb[0].mxu0 %v286
        %v385 = vpop.f32.mrb[0].mxu0
        %v386 = vadd.f32 0.0, %v385
        %v387 = vpop.f32.mrb[0].mxu0
        %v388 = vpop.f32.mrb[0].mxu0
        %v389 = vadd.f32 0.0, %v388
        %v390 = vpop.f32.mrb[0].mxu0
        %391 = vdwg.mxu0
        %v408 = vunpack.c.l.b16 %v268
        %v409 = vunpack.c.l.b16 %v269
        %v410 = vunpack.c.l.b16 %v270
        %v411 = vunpack.c.l.b16 %v271
        %v412 = vunpack.c.l.b16 %v272
        %v413 = vunpack.c.l.b16 %v273
        %v414 = vunpack.c.l.b16 %v274
        %v415 = vunpack.c.l.b16 %v275
        %v416 = vunpack.c.l.b16 %v276
        %v417 = vunpack.c.l.b16 %v277
        %v418 = vunpack.c.l.b16 %v278
        %v419 = vunpack.c.l.b16 %v279
        %v420 = vunpack.c.l.b16 %v280
        %v421 = vunpack.c.l.b16 %v281
        %v422 = vunpack.c.l.b16 %v282
        %v423 = vunpack.c.l.b16 %v283
        %v424 = vpack.c.b16 %v409, %v408
        %v425 = vpack.c.b16 %v411, %v410
        %v426 = vpack.c.b16 %v413, %v412
        %v427 = vpack.c.b16 %v415, %v414
        %v428 = vpack.c.b16 %v417, %v416
        %v429 = vpack.c.b16 %v419, %v418
        %v430 = vpack.c.b16 %v421, %v420
        %v431 = vpack.c.b16 %v423, %v422
        %440 = vmatprep.subr.bf16.mxu0 0
        %441 = vmatpush1.bf16.msra.mxu0 %v424
        %442 = vmatprep.subr.bf16.mxu0 0
        %443 = vmatpush1.bf16.msra.mxu0 %v425
        %444 = vmatprep.subr.bf16.mxu0 0
        %445 = vmatpush1.bf16.msra.mxu0 %v426
        %446 = vmatprep.subr.bf16.mxu0 0
        %447 = vmatpush1.bf16.msra.mxu0 %v427
        %448 = vmatprep.subr.bf16.mxu0 0
        %449 = vmatpush1.bf16.msra.mxu0 %v428
        %450 = vmatprep.subr.bf16.mxu0 0
        %451 = vmatpush1.bf16.msra.mxu0 %v429
        %452 = vmatprep.subr.bf16.mxu0 0
        %453 = vmatpush1.bf16.msra.mxu0 %v430
        %454 = vmatprep.subr.bf16.mxu0 0
        %455 = vmatpush1.bf16.msra.mxu0 %v431
        %456 = vmatprep.subr.bf16.mxu0 0
        %457 = vmatpush1.bf16.msra.mxu0 0
        %458 = vmatprep.subr.bf16.mxu0 0
        %459 = vmatpush1.bf16.msra.mxu0 0
        %460 = vmatprep.subr.bf16.mxu0 0
        %461 = vmatpush1.bf16.msra.mxu0 0
        %462 = vmatprep.subr.bf16.mxu0 0
        %463 = vmatpush1.bf16.msra.mxu0 0
        %464 = vmatprep.subr.bf16.mxu0 0
        %465 = vmatpush1.bf16.msra.mxu0 0
        %466 = vmatprep.subr.bf16.mxu0 0
        %467 = vmatpush1.bf16.msra.mxu0 0
        %468 = vmatprep.subr.bf16.mxu0 0
        %469 = vmatpush1.bf16.msra.mxu0 0
        %470 = vmatprep.subr.bf16.mxu0 0
        %471 = vmatpush1.bf16.msra.mxu0 0
        %472 = vmatprep.mubr.bf16.mxu0 0
        %473 = vmatmul.mubr.bf16.gmra.mrb[0].mxu0 %v267
        %v474 = vpop.f32.mrb[0].mxu0
        %v475 = vadd.f32 %v386, %v474
        %v476 = vpop.f32.mrb[0].mxu0
        %v477 = vpop.f32.mrb[0].mxu0
        %v478 = vadd.f32 %v389, %v477
        %v479 = vpop.f32.mrb[0].mxu0
        %480 = vdwg.mxu0
        %v481 = vld [vmem:[%s252 + $0x2] sm:$0xff]
        %v482 = vld [vmem:[%s252 + $0xa] sm:$0xff]
        %v483 = vpack.c.bf16 %v482, %v481
        %v484 = vld [vmem:[#allocation3 + $0x80] sm:$0xf]
        %v485 = vld [vmem:[#allocation3 + $0x84] sm:$0xf]
        %v486 = vld [vmem:[#allocation3 + $0x88] sm:$0xf]
        %v487 = vld [vmem:[#allocation3 + $0x8c] sm:$0xf]
        %v488 = vld [vmem:[#allocation3 + $0x90] sm:$0xf]
        %v489 = vld [vmem:[#allocation3 + $0x94] sm:$0xf]
        %v490 = vld [vmem:[#allocation3 + $0x98] sm:$0xf]
        %v491 = vld [vmem:[#allocation3 + $0x9c] sm:$0xf]
        %v492 = vld [vmem:[#allocation3 + $0xa0] sm:$0xf]
        %v493 = vld [vmem:[#allocation3 + $0xa4] sm:$0xf]
        %v494 = vld [vmem:[#allocation3 + $0xa8] sm:$0xf]
        %v495 = vld [vmem:[#allocation3 + $0xac] sm:$0xf]
        %v496 = vld [vmem:[#allocation3 + $0xb0] sm:$0xf]
        %v497 = vld [vmem:[#allocation3 + $0xb4] sm:$0xf]
        %v498 = vld [vmem:[#allocation3 + $0xb8] sm:$0xf]
        %v499 = vld [vmem:[#allocation3 + $0xbc] sm:$0xf]
        %v516 = vunpack.c.l.b16 %v484
        %v517 = vunpack.c.l.b16 %v485
        %v518 = vunpack.c.l.b16 %v486
        %v519 = vunpack.c.l.b16 %v487
        %v520 = vunpack.c.l.b16 %v488
        %v521 = vunpack.c.l.b16 %v489
        %v522 = vunpack.c.l.b16 %v490
        %v523 = vunpack.c.l.b16 %v491
        %v524 = vunpack.c.l.b16 %v492
        %v525 = vunpack.c.l.b16 %v493
        %v526 = vunpack.c.l.b16 %v494
        %v527 = vunpack.c.l.b16 %v495
        %v528 = vunpack.c.l.b16 %v496
        %v529 = vunpack.c.l.b16 %v497
        %v530 = vunpack.c.l.b16 %v498
        %v531 = vunpack.c.l.b16 %v499
        %v532 = vpack.c.b16 %v517, %v516
        %v533 = vpack.c.b16 %v519, %v518
        %v534 = vpack.c.b16 %v521, %v520
        %v535 = vpack.c.b16 %v523, %v522
        %v536 = vpack.c.b16 %v525, %v524
        %v537 = vpack.c.b16 %v527, %v526
        %v538 = vpack.c.b16 %v529, %v528
        %v539 = vpack.c.b16 %v531, %v530
        %548 = vmatprep.subr.bf16.mxu0 0
        %549 = vmatpush1.bf16.msra.mxu0 %v532
        %550 = vmatprep.subr.bf16.mxu0 0
        %551 = vmatpush1.bf16.msra.mxu0 %v533
        %552 = vmatprep.subr.bf16.mxu0 0
        %553 = vmatpush1.bf16.msra.mxu0 %v534
        %554 = vmatprep.subr.bf16.mxu0 0
        %555 = vmatpush1.bf16.msra.mxu0 %v535
        %556 = vmatprep.subr.bf16.mxu0 0
        %557 = vmatpush1.bf16.msra.mxu0 %v536
        %558 = vmatprep.subr.bf16.mxu0 0
        %559 = vmatpush1.bf16.msra.mxu0 %v537
        %560 = vmatprep.subr.bf16.mxu0 0
        %561 = vmatpush1.bf16.msra.mxu0 %v538
        %562 = vmatprep.subr.bf16.mxu0 0
        %563 = vmatpush1.bf16.msra.mxu0 %v539
        %564 = vmatprep.subr.bf16.mxu0 0
        %565 = vmatpush1.bf16.msra.mxu0 0
        %566 = vmatprep.subr.bf16.mxu0 0
        %567 = vmatpush1.bf16.msra.mxu0 0
        %568 = vmatprep.subr.bf16.mxu0 0
        %569 = vmatpush1.bf16.msra.mxu0 0
        %570 = vmatprep.subr.bf16.mxu0 0
        %571 = vmatpush1.bf16.msra.mxu0 0
        %572 = vmatprep.subr.bf16.mxu0 0
        %573 = vmatpush1.bf16.msra.mxu0 0
        %574 = vmatprep.subr.bf16.mxu0 0
        %575 = vmatpush1.bf16.msra.mxu0 0
        %576 = vmatprep.subr.bf16.mxu0 0
        %577 = vmatpush1.bf16.msra.mxu0 0
        %578 = vmatprep.subr.bf16.mxu0 0
        %579 = vmatpush1.bf16.msra.mxu0 0
        %580 = vmatprep.mubr.bf16.mxu0 0
        %581 = vmatmul.mubr.bf16.gmra.mrb[0].mxu0 %v483
        %v582 = vpop.f32.mrb[0].mxu0
        %v583 = vadd.f32 0.0, %v582
        %v584 = vpop.f32.mrb[0].mxu0
        %v585 = vpop.f32.mrb[0].mxu0
        %v586 = vadd.f32 0.0, %v585
        %v587 = vpop.f32.mrb[0].mxu0
        %588 = vdwg.mxu0
        %v589 = vadd.f32 %v475, %v583
        %v590 = vadd.f32 %v478, %v586
        %v591 = vld [vmem:[%s2] sm:$0x1]
        %v593 = vlaneseq
        %v594 = vshrl.u32 %v593, 7
        %v595 = vsub.s32 0, %v594
        %v596 = vrot.slane %v591, %v595
        %v598 = vadd.f32 %v589, %v596
        %v599 = vadd.f32 %v590, %v596
        %v600 = vmax.f32 %v598, 0.0
        %v601 = vmax.f32 %v599, 0.0
        %v602 = vpack.c.bf16 %v601, %v600
        %v604 = vunpack.c.l.b16 %v602
        %v605 = vunpack.c.h.b16 %v602
        %v606 = vpack.c.b16 %v604, %v604
        %v607 = vpack.c.b16 %v605, %v605
        %vm608 = vsmask.f32 4368
        %vm609 = vmor %vm255, %vm608
        %v611 = vshrl.u32 %v606, 16
        %v613 = vrot.slane %v611, 7
        %v614 = vshll.u32 %v606, 16
        %v616 = vor.u32 %v613, %v614
        %v617 = vrot.slane %v613, 4
        %v619 = vshrl.u32 %v607, 16
        %v621 = vrot.slane %v619, 7
        %v622 = vshll.u32 %v607, 16
        %v624 = vor.u32 %v621, %v622
        %v625 = vsel %vm609, %v617, %v624
        %v626 = vrot.slane %v621, 4
        %vm630 = vcmask 1043456
        %vm631 = vmand %vm630, %vm260
        %v632 = vld [vmem:[#allocation2] sm:$0xf]
        %v633 = vsel %vm631, %v616, %v632
        %634 = vst [vmem:[#allocation2] sm:$0xf] %v633
        %635 = vst [vmem:[#allocation2 + $0x4] sm:$0xf] %v625
        %v636 = vld [vmem:[#allocation2 + $0x8] sm:$0x1]
        %v637 = vsel %vm256, %v626, %v636
        %638 = vst [vmem:[#allocation2 + $0x8] sm:$0x1] %v637
        %v639 = vld [vmem:[#allocation2] sm:$0xf]
        %v640 = vld [vmem:[#allocation2 + $0x4] sm:$0xf]
        %v641 = vld [vmem:[#allocation6] sm:$0xf]
        %v642 = vld [vmem:[#allocation6 + $0x4] sm:$0xf]
        %v643 = vld [vmem:[#allocation6 + $0x8] sm:$0xf]
        %v644 = vld [vmem:[#allocation6 + $0xc] sm:$0xf]
        %v645 = vld [vmem:[#allocation6 + $0x10] sm:$0xf]
        %v646 = vld [vmem:[#allocation6 + $0x14] sm:$0xf]
        %v647 = vld [vmem:[#allocation6 + $0x18] sm:$0xf]
        %v648 = vld [vmem:[#allocation6 + $0x1c] sm:$0xf]
        %v649 = vld [vmem:[#allocation6 + $0x20] sm:$0xf]
        %v650 = vld [vmem:[#allocation6 + $0x24] sm:$0xf]
        %v651 = vld [vmem:[#allocation6 + $0x28] sm:$0xf]
        %v652 = vld [vmem:[#allocation6 + $0x2c] sm:$0xf]
        %v653 = vld [vmem:[#allocation6 + $0x30] sm:$0xf]
        %v654 = vld [vmem:[#allocation6 + $0x34] sm:$0xf]
        %v655 = vld [vmem:[#allocation6 + $0x38] sm:$0xf]
        %v656 = vld [vmem:[#allocation6 + $0x3c] sm:$0xf]
        %v657 = vld [vmem:[#allocation2 + $0x8] sm:$0x1]
        %v658 = vld [vmem:[#allocation6 + $0x40] sm:$0xf]
        %v659 = vld [vmem:[#allocation6 + $0x44] sm:$0xf]
        %v660 = vld [vmem:[#allocation6 + $0x48] sm:$0xf]
        %v661 = vld [vmem:[#allocation6 + $0x4c] sm:$0xf]
        %v662 = vld [vmem:[#allocation6 + $0x50] sm:$0xf]
        %v663 = vld [vmem:[#allocation6 + $0x54] sm:$0xf]
        %v664 = vld [vmem:[#allocation6 + $0x58] sm:$0xf]
        %v665 = vld [vmem:[#allocation6 + $0x5c] sm:$0xf]
        %v666 = vld [vmem:[#allocation6 + $0x60] sm:$0xf]
        %v667 = vld [vmem:[#allocation6 + $0x64] sm:$0xf]
        %v668 = vld [vmem:[#allocation6 + $0x68] sm:$0xf]
        %v669 = vld [vmem:[#allocation6 + $0x6c] sm:$0xf]
        %v670 = vld [vmem:[#allocation6 + $0x70] sm:$0xf]
        %v671 = vld [vmem:[#allocation6 + $0x74] sm:$0xf]
        %v672 = vld [vmem:[#allocation6 + $0x78] sm:$0xf]
        %v673 = vld [vmem:[#allocation6 + $0x7c] sm:$0xf]
        %v677 = vunpack.c.l.b16 %v639
        %v678 = vunpack.c.l.b16 %v640
        %v679 = vunpack.c.l.b16 %v657
        %v680 = vpack.c.b16 %v678, %v677
        %v681 = vpack.c.b16 %v679, %v679
        %vm682 = vsmask.f32 7424
        %v684 = vshrl.u32 %v680, 16
        %v686 = vshll.u32 %v680, 16
        %v688 = vrot.slane %v686, 1
        %v689 = vor.u32 %v684, %v688
        %v691 = vshll.u32 %v681, 16
        %v693 = vrot.slane %v691, 1
        %v694 = vsel %vm682, %v689, %v693
        %v712 = vunpack.c.l.b16 %v658
        %v713 = vunpack.c.l.b16 %v659
        %v714 = vunpack.c.l.b16 %v660
        %v715 = vunpack.c.l.b16 %v661
        %v716 = vunpack.c.l.b16 %v662
        %v717 = vunpack.c.l.b16 %v663
        %v718 = vunpack.c.l.b16 %v664
        %v719 = vunpack.c.l.b16 %v665
        %v720 = vunpack.c.l.b16 %v666
        %v721 = vunpack.c.l.b16 %v667
        %v722 = vunpack.c.l.b16 %v668
        %v723 = vunpack.c.l.b16 %v669
        %v724 = vunpack.c.l.b16 %v670
        %v725 = vunpack.c.l.b16 %v671
        %v726 = vunpack.c.l.b16 %v672
        %v727 = vunpack.c.l.b16 %v673
        %v728 = vpack.c.b16 %v713, %v712
        %v729 = vpack.c.b16 %v715, %v714
        %v730 = vpack.c.b16 %v717, %v716
        %v731 = vpack.c.b16 %v719, %v718
        %v732 = vpack.c.b16 %v721, %v720
        %v733 = vpack.c.b16 %v723, %v722
        %v734 = vpack.c.b16 %v725, %v724
        %v735 = vpack.c.b16 %v727, %v726
        %744 = vmatprep.subr.bf16.mxu0 0
        %745 = vmatpush1.bf16.msra.mxu0 %v728
        %746 = vmatprep.subr.bf16.mxu0 0
        %747 = vmatpush1.bf16.msra.mxu0 %v729
        %748 = vmatprep.subr.bf16.mxu0 0
        %749 = vmatpush1.bf16.msra.mxu0 %v730
        %750 = vmatprep.subr.bf16.mxu0 0
        %751 = vmatpush1.bf16.msra.mxu0 %v731
        %752 = vmatprep.subr.bf16.mxu0 0
        %753 = vmatpush1.bf16.msra.mxu0 %v732
        %754 = vmatprep.subr.bf16.mxu0 0
        %755 = vmatpush1.bf16.msra.mxu0 %v733
        %756 = vmatprep.subr.bf16.mxu0 0
        %757 = vmatpush1.bf16.msra.mxu0 %v734
        %758 = vmatprep.subr.bf16.mxu0 0
        %759 = vmatpush1.bf16.msra.mxu0 %v735
        %760 = vmatprep.subr.bf16.mxu0 0
        %761 = vmatpush1.bf16.msra.mxu0 0
        %762 = vmatprep.subr.bf16.mxu0 0
        %763 = vmatpush1.bf16.msra.mxu0 0
        %764 = vmatprep.subr.bf16.mxu0 0
        %765 = vmatpush1.bf16.msra.mxu0 0
        %766 = vmatprep.subr.bf16.mxu0 0
        %767 = vmatpush1.bf16.msra.mxu0 0
        %768 = vmatprep.subr.bf16.mxu0 0
        %769 = vmatpush1.bf16.msra.mxu0 0
        %770 = vmatprep.subr.bf16.mxu0 0
        %771 = vmatpush1.bf16.msra.mxu0 0
        %772 = vmatprep.subr.bf16.mxu0 0
        %773 = vmatpush1.bf16.msra.mxu0 0
        %774 = vmatprep.subr.bf16.mxu0 0
        %775 = vmatpush1.bf16.msra.mxu0 0
        %776 = vmatprep.mubr.bf16.mxu0 0
        %777 = vmatmul.mubr.bf16.gmra.mrb[0].mxu0 %v694
        %v778 = vpop.f32.mrb[0].mxu0
        %v779 = vadd.f32 0.0, %v778
        %v780 = vpop.f32.mrb[0].mxu0
        %v781 = vpop.f32.mrb[0].mxu0
        %v782 = vadd.f32 0.0, %v781
        %v783 = vpop.f32.mrb[0].mxu0
        %784 = vdwg.mxu0
        %v802 = vunpack.c.l.b16 %v641
        %v803 = vunpack.c.l.b16 %v642
        %v804 = vunpack.c.l.b16 %v643
        %v805 = vunpack.c.l.b16 %v644
        %v806 = vunpack.c.l.b16 %v645
        %v807 = vunpack.c.l.b16 %v646
        %v808 = vunpack.c.l.b16 %v647
        %v809 = vunpack.c.l.b16 %v648
        %v810 = vunpack.c.l.b16 %v649
        %v811 = vunpack.c.l.b16 %v650
        %v812 = vunpack.c.l.b16 %v651
        %v813 = vunpack.c.l.b16 %v652
        %v814 = vunpack.c.l.b16 %v653
        %v815 = vunpack.c.l.b16 %v654
        %v816 = vunpack.c.l.b16 %v655
        %v817 = vunpack.c.l.b16 %v656
        %v818 = vpack.c.b16 %v803, %v802
        %v819 = vpack.c.b16 %v805, %v804
        %v820 = vpack.c.b16 %v807, %v806
        %v821 = vpack.c.b16 %v809, %v808
        %v822 = vpack.c.b16 %v811, %v810
        %v823 = vpack.c.b16 %v813, %v812
        %v824 = vpack.c.b16 %v815, %v814
        %v825 = vpack.c.b16 %v817, %v816
        %834 = vmatprep.subr.bf16.mxu0 0
        %835 = vmatpush1.bf16.msra.mxu0 %v818
        %836 = vmatprep.subr.bf16.mxu0 0
        %837 = vmatpush1.bf16.msra.mxu0 %v819
        %838 = vmatprep.subr.bf16.mxu0 0
        %839 = vmatpush1.bf16.msra.mxu0 %v820
        %840 = vmatprep.subr.bf16.mxu0 0
        %841 = vmatpush1.bf16.msra.mxu0 %v821
        %842 = vmatprep.subr.bf16.mxu0 0
        %843 = vmatpush1.bf16.msra.mxu0 %v822
        %844 = vmatprep.subr.bf16.mxu0 0
        %845 = vmatpush1.bf16.msra.mxu0 %v823
        %846 = vmatprep.subr.bf16.mxu0 0
        %847 = vmatpush1.bf16.msra.mxu0 %v824
        %848 = vmatprep.subr.bf16.mxu0 0
        %849 = vmatpush1.bf16.msra.mxu0 %v825
        %850 = vmatprep.subr.bf16.mxu0 0
        %851 = vmatpush1.bf16.msra.mxu0 0
        %852 = vmatprep.subr.bf16.mxu0 0
        %853 = vmatpush1.bf16.msra.mxu0 0
        %854 = vmatprep.subr.bf16.mxu0 0
        %855 = vmatpush1.bf16.msra.mxu0 0
        %856 = vmatprep.subr.bf16.mxu0 0
        %857 = vmatpush1.bf16.msra.mxu0 0
        %858 = vmatprep.subr.bf16.mxu0 0
        %859 = vmatpush1.bf16.msra.mxu0 0
        %860 = vmatprep.subr.bf16.mxu0 0
        %861 = vmatpush1.bf16.msra.mxu0 0
        %862 = vmatprep.subr.bf16.mxu0 0
        %863 = vmatpush1.bf16.msra.mxu0 0
        %864 = vmatprep.subr.bf16.mxu0 0
        %865 = vmatpush1.bf16.msra.mxu0 0
        %866 = vmatprep.mubr.bf16.mxu0 0
        %867 = vmatmul.mubr.bf16.gmra.mrb[0].mxu0 %v680
        %v868 = vpop.f32.mrb[0].mxu0
        %v869 = vadd.f32 %v779, %v868
        %v870 = vpop.f32.mrb[0].mxu0
        %v871 = vpop.f32.mrb[0].mxu0
        %v872 = vadd.f32 %v782, %v871
        %v873 = vpop.f32.mrb[0].mxu0
        %874 = vdwg.mxu0
        %v875 = vld [vmem:[#allocation2] sm:$0xe]
        %v876 = vld [vmem:[#allocation6 + $0x80] sm:$0xf]
        %v877 = vld [vmem:[#allocation6 + $0x84] sm:$0xf]
        %v878 = vld [vmem:[#allocation6 + $0x88] sm:$0xf]
        %v879 = vld [vmem:[#allocation6 + $0x8c] sm:$0xf]
        %v880 = vld [vmem:[#allocation6 + $0x90] sm:$0xf]
        %v881 = vld [vmem:[#allocation6 + $0x94] sm:$0xf]
        %v882 = vld [vmem:[#allocation6 + $0x98] sm:$0xf]
        %v883 = vld [vmem:[#allocation6 + $0x9c] sm:$0xf]
        %v884 = vld [vmem:[#allocation6 + $0xa0] sm:$0xf]
        %v885 = vld [vmem:[#allocation6 + $0xa4] sm:$0xf]
        %v886 = vld [vmem:[#allocation6 + $0xa8] sm:$0xf]
        %v887 = vld [vmem:[#allocation6 + $0xac] sm:$0xf]
        %v888 = vld [vmem:[#allocation6 + $0xb0] sm:$0xf]
        %v889 = vld [vmem:[#allocation6 + $0xb4] sm:$0xf]
        %v890 = vld [vmem:[#allocation6 + $0xb8] sm:$0xf]
        %v891 = vld [vmem:[#allocation6 + $0xbc] sm:$0xf]
        %v893 = vunpack.c.l.b16 %v875
        %v894 = vpack.c.b16 %v678, %v893
        %vm895 = vcmask 1046528
        %v896 = vrot.slane %v894, 1
        %v897 = vrot.slane %v681, 1
        %v898 = vsel %vm895, %v896, %v897
        %v916 = vunpack.c.l.b16 %v876
        %v917 = vunpack.c.l.b16 %v877
        %v918 = vunpack.c.l.b16 %v878
        %v919 = vunpack.c.l.b16 %v879
        %v920 = vunpack.c.l.b16 %v880
        %v921 = vunpack.c.l.b16 %v881
        %v922 = vunpack.c.l.b16 %v882
        %v923 = vunpack.c.l.b16 %v883
        %v924 = vunpack.c.l.b16 %v884
        %v925 = vunpack.c.l.b16 %v885
        %v926 = vunpack.c.l.b16 %v886
        %v927 = vunpack.c.l.b16 %v887
        %v928 = vunpack.c.l.b16 %v888
        %v929 = vunpack.c.l.b16 %v889
        %v930 = vunpack.c.l.b16 %v890
        %v931 = vunpack.c.l.b16 %v891
        %v932 = vpack.c.b16 %v917, %v916
        %v933 = vpack.c.b16 %v919, %v918
        %v934 = vpack.c.b16 %v921, %v920
        %v935 = vpack.c.b16 %v923, %v922
        %v936 = vpack.c.b16 %v925, %v924
        %v937 = vpack.c.b16 %v927, %v926
        %v938 = vpack.c.b16 %v929, %v928
        %v939 = vpack.c.b16 %v931, %v930
        %948 = vmatprep.subr.bf16.mxu0 0
        %949 = vmatpush1.bf16.msra.mxu0 %v932
        %950 = vmatprep.subr.bf16.mxu0 0
        %951 = vmatpush1.bf16.msra.mxu0 %v933
        %952 = vmatprep.subr.bf16.mxu0 0
        %953 = vmatpush1.bf16.msra.mxu0 %v934
        %954 = vmatprep.subr.bf16.mxu0 0
        %955 = vmatpush1.bf16.msra.mxu0 %v935
        %956 = vmatprep.subr.bf16.mxu0 0
        %957 = vmatpush1.bf16.msra.mxu0 %v936
        %958 = vmatprep.subr.bf16.mxu0 0
        %959 = vmatpush1.bf16.msra.mxu0 %v937
        %960 = vmatprep.subr.bf16.mxu0 0
        %961 = vmatpush1.bf16.msra.mxu0 %v938
        %962 = vmatprep.subr.bf16.mxu0 0
        %963 = vmatpush1.bf16.msra.mxu0 %v939
        %964 = vmatprep.subr.bf16.mxu0 0
        %965 = vmatpush1.bf16.msra.mxu0 0
        %966 = vmatprep.subr.bf16.mxu0 0
        %967 = vmatpush1.bf16.msra.mxu0 0
        %968 = vmatprep.subr.bf16.mxu0 0
        %969 = vmatpush1.bf16.msra.mxu0 0
        %970 = vmatprep.subr.bf16.mxu0 0
        %971 = vmatpush1.bf16.msra.mxu0 0
        %972 = vmatprep.subr.bf16.mxu0 0
        %973 = vmatpush1.bf16.msra.mxu0 0
        %974 = vmatprep.subr.bf16.mxu0 0
        %975 = vmatpush1.bf16.msra.mxu0 0
        %976 = vmatprep.subr.bf16.mxu0 0
        %977 = vmatpush1.bf16.msra.mxu0 0
        %978 = vmatprep.subr.bf16.mxu0 0
        %979 = vmatpush1.bf16.msra.mxu0 0
        %980 = vmatprep.mubr.bf16.mxu0 0
        %981 = vmatmul.mubr.bf16.gmra.mrb[0].mxu0 %v898
        %v982 = vpop.f32.mrb[0].mxu0
        %v983 = vadd.f32 0.0, %v982
        %v984 = vpop.f32.mrb[0].mxu0
        %v985 = vpop.f32.mrb[0].mxu0
        %v986 = vadd.f32 0.0, %v985
        %v987 = vpop.f32.mrb[0].mxu0
        %988 = vdwg.mxu0
        %v989 = vadd.f32 %v869, %v983
        %v990 = vadd.f32 %v872, %v986
        %v991 = vld [vmem:[%s4] sm:$0x1]
        %v993 = vlaneseq
        %v994 = vshrl.u32 %v993, 7
        %v995 = vsub.s32 0, %v994
        %v996 = vrot.slane %v991, %v995
        %v998 = vadd.f32 %v989, %v996
        %v999 = vadd.f32 %v990, %v996
        %v1000 = vld [vmem:[%s252 + $0x1] sm:$0xff]
        %v1001 = vld [vmem:[%s252 + $0x9] sm:$0xff]
        %v1002 = vadd.f32 %v998, %v1000
        %v1003 = vadd.f32 %v999, %v1001
        %v1004 = vmax.f32 %v1002, 0.0
        %v1005 = vmax.f32 %v1003, 0.0
        %1006 = vst [vmem:[%s247] sm:$0xff] %v1004
        %1007 = vst [vmem:[%s247 + $0x8] sm:$0xff] %v1005
        %s1008 = sand.u32 %s139, 1
        %s1009 = scalar_lea.sflag [#allocation5], %s1008
        %s1010 = sand.u32 %s139, 1
        %s1011 = smul.addr %s1010, 16
        %s1012 = scalar_lea.vmem [#allocation8], %s1011
        // Predicated region
        $region49: #{tpu_custom_call.1} parent=39 // pred_check
          %p1013 = pneg %p149
        $region50: #{tpu_custom_call.1} parent=39 // pred_check_branch
          %1015 = sbr.rel (%p1013) target = $region52
        $region51: #{tpu_custom_call.1} parent=39 // pred_region
          %s1017 = ssub.s32 256, 256
          %1018 = vsyncadd %s1009, %s1017
          %s1019 = smul.addr %s21, 2
          %s1020 = smul.addr %s1019, 128
          %s1021 = scalar_lea.hbm %s5, %s1020
          %s1022 = sshll.u32 %s1012, 4
          %s1023 = int_to_ptr.vmem [resolvable:$true] %s1022
          %1028 = dma.vmem_to_hbm [thread:$0]  %s1023, 256, %s1021, %s1009, 128, 128, 8
        $region52: #{tpu_custom_call.1} parent=39 // pred_fallthru
          _
      $region40: #{tpu_custom_call.1} parent=5 // pred_fallthru
        _
      %p1029 = scmp.le.s32.totalorder 2, %s16
      // Predicated region
      $region53: #{tpu_custom_call.1} parent=5 // pred_check
        %p1030 = pneg %p1029
      $region54: #{tpu_custom_call.1} parent=5 // pred_check_branch
        %1032 = sbr.rel (%p1030) target = $region56
      $region55: #{tpu_custom_call.1} parent=5 // pred_region
        %s1033 = ssub.s32 %s16, 2
        // Predicated region
        $region57: #{tpu_custom_call.1} parent=55 // pred_check
          %p1034 = pneg %p155
        $region58: #{tpu_custom_call.1} parent=55 // pred_check_branch
          %1036 = sbr.rel (%p1034) target = $region60
        $region59: #{tpu_custom_call.1} parent=55 // pred_region
          %s1037 = sand.u32 %s140, 1
          %s1038 = scalar_lea.sflag [#allocation5], %s1037
          %s1039 = sand.u32 %s140, 1
          %s1040 = smul.addr %s1039, 16
          %s1041 = scalar_lea.vmem [#allocation8], %s1040
          %1042 = dma.done %s1038, 256
        $region60: #{tpu_custom_call.1} parent=55 // pred_fallthru
          _
      $region56: #{tpu_custom_call.1} parent=5 // pred_fallthru
        _
    $region6: #{tpu_custom_call.1} parent=1 // loop_footer
      %s20 = sadd.s32 1, %s16
    $region7: #{tpu_custom_call.1} parent=1 // loop_footer_branch
      %15 = sbr.rel target = $region3
    $region8: #{tpu_custom_call.1} parent=1 // loop_exit
      _
    %1043 = vsyncpa [#allocation4], 1
    %s1044 = scalar_lea.sflag [#allocation4], 1
    %1045 = vsyncpa %s1044, 1
    %1046 = vsyncpa [#allocation7], 1
    %1047 = vsyncpa [#allocation5], 1
    %s1048 = scalar_lea.sflag [#allocation5], 1
    %1049 = vsyncpa %s1048, 1

</llo_original>
